<compile_context>
chip_gen: v7x
topology: tpu7x:2x2x1
jax: 0.10.0
libtpu: 0.0.40
codegen_flags: <defaults>
</compile_context>

<pallas_src>
import numpy as np
import jax
import jax.numpy as jnp
from jax.experimental import pallas as pl
from jax.experimental.pallas import tpu as pltpu


# ---------------------------------------------------------------------------
# Host-side interpolation-matrix builders (static per output size).
# ---------------------------------------------------------------------------
def _bilinear_matrix(out_n: int, in_n: int) -> np.ndarray:
    """[out_n, in_n] 1-D bilinear weights (align_corners=False, half-pixel)."""
    scale = in_n / out_n
    src = (np.arange(out_n, dtype=np.float64) + 0.5) * scale - 0.5
    src = np.clip(src, 0.0, in_n - 1)
    lo = np.floor(src).astype(np.int64)
    hi = np.minimum(lo + 1, in_n - 1)
    frac = src - lo
    w = np.zeros((out_n, in_n), dtype=np.float32)
    rows = np.arange(out_n)
    w[rows, lo] += (1.0 - frac).astype(np.float32)
    w[rows, hi] += frac.astype(np.float32)
    return w


def _nearest_index(out_n: int, in_n: int) -> np.ndarray:
    """Source index per output pixel for torch NEAREST: floor(dst * in/out)."""
    scale = in_n / out_n
    src = np.floor(np.arange(out_n, dtype=np.float64) * scale).astype(np.int64)
    return np.minimum(src, in_n - 1)


def _nearest_matrix(out_n: int, in_n: int) -> np.ndarray:
    """One-hot [out_n, in_n] selection matrix for 1-D nearest resize."""
    src = _nearest_index(out_n, in_n)
    w = np.zeros((out_n, in_n), dtype=np.float32)
    w[np.arange(out_n), src] = 1.0
    return w


# ---------------------------------------------------------------------------
# Pallas kernel: resize one (H_in, W_in) plane to (H_out, W_out).
# ---------------------------------------------------------------------------
def _resize_plane_kernel(wh_ref, wwt_ref, x_ref, o_ref):
    x = x_ref[...].astype(jnp.float32)                                  # (H_in, W_in)
    t = jnp.dot(wh_ref[...], x, preferred_element_type=jnp.float32)     # (H_out, W_in)
    y = jnp.dot(t, wwt_ref[...], preferred_element_type=jnp.float32)    # (H_out, W_out)
    if jnp.issubdtype(o_ref.dtype, jnp.integer):
        # Nearest weights are exact one-hot 0/1 so y is already integral;
        # round defensively before the cast.
        y = jnp.round(y)
    o_ref[...] = y.astype(o_ref.dtype)


def _resize_stack(x, wh, wwt):
    """Resize a [N, H_in, W_in] stack of planes with the given 1-D matrices."""
    n, h_in, w_in = x.shape
    h_out, w_out = wh.shape[0], wwt.shape[1]

    grid_spec = pltpu.PrefetchScalarGridSpec(
        num_scalar_prefetch=0,
        grid=(n,),
        in_specs=[
            # Interpolation matrices: constant index_map -> fetched once, resident.
            pl.BlockSpec((h_out, h_in), lambda i: (0, 0)),
            pl.BlockSpec((w_in, w_out), lambda i: (0, 0)),
            # One plane per grid step; leading dim squeezed away in the kernel.
            pl.BlockSpec((None, h_in, w_in), lambda i: (i, 0, 0)),
        ],
        out_specs=pl.BlockSpec((None, h_out, w_out), lambda i: (i, 0, 0)),
    )

    return pl.pallas_call(
        _resize_plane_kernel,
        out_shape=jax.ShapeDtypeStruct((n, h_out, w_out), x.dtype),
        grid_spec=grid_spec,
        compiler_params=pltpu.CompilerParams(
            # Planes are independent -> shard the grid across TensorCores (v7x).
            dimension_semantics=("parallel",),
        ),
    )(wh, wwt, x)


def resize(image, label, size, ratio_range=(1.0, 1.0), *, key):
    """Pallas implementation of Resize.forward((image, label)).

    image: [C, H, W] float, label: [1, H, W] int.  Output spatial size is
    [int(size[0]*ratio), int(size[1]*ratio)] with ratio drawn on the host so
    the output shape is a static Python int per call (as in the torch module,
    where the shape also changes per call).
    """
    r0, r1 = float(ratio_range[0]), float(ratio_range[1])
    ratio = float(jax.random.uniform(key, (), minval=r0, maxval=r1))
    out_h = int(size[0] * ratio)
    out_w = int(size[1] * ratio)

    _, h_in, w_in = image.shape

    # TODO(synk): torchvision>=0.17 applies antialiasing for BILINEAR
    # downsampling by default; this implements the classic antialias=False
    # half-pixel bilinear kernel.
    wh_img = jnp.asarray(_bilinear_matrix(out_h, h_in))
    wwt_img = jnp.asarray(_bilinear_matrix(out_w, w_in).T)
    wh_lbl = jnp.asarray(_nearest_matrix(out_h, h_in))
    wwt_lbl = jnp.asarray(_nearest_matrix(out_w, w_in).T)

    image_out = _resize_stack(image, wh_img, wwt_img)
    label_out = _resize_stack(label, wh_lbl, wwt_lbl)
    return image_out, label_out, (out_h, out_w)


# ---------------------------------------------------------------------------
# Independent gather-based references (plain JAX/numpy) for verification.
# ---------------------------------------------------------------------------
def _ref_bilinear(x, out_h, out_w):
    _, h, w = x.shape

    def coords(out_n, in_n):
        src = (np.arange(out_n, dtype=np.float64) + 0.5) * (in_n / out_n) - 0.5
        src = np.clip(src, 0.0, in_n - 1)
        lo = np.floor(src).astype(np.int64)
        hi = np.minimum(lo + 1, in_n - 1)
        frac = (src - lo).astype(np.float32)
        return lo, hi, frac

    ylo, yhi, yf = coords(out_h, h)
    xlo, xhi, xf = coords(out_w, w)
    g = lambda yy, xx: x[:, yy, :][:, :, xx]
    xf_b = jnp.asarray(xf)[None, None, :]
    yf_b = jnp.asarray(yf)[None, :, None]
    top = g(ylo, xlo) * (1.0 - xf_b) + g(ylo, xhi) * xf_b
    bot = g(yhi, xlo) * (1.0 - xf_b) + g(yhi, xhi) * xf_b
    return top * (1.0 - yf_b) + bot * yf_b


def _ref_nearest(x, out_h, out_w):
    _, h, w = x.shape
    yi = _nearest_index(out_h, h)
    xi = _nearest_index(out_w, w)
    return x[:, yi, :][:, :, xi]


if __name__ == "__main__":
    key = jax.random.PRNGKey(0)
    k_img, k_lbl, k_ratio = jax.random.split(key, 3)

    # Small CHW shapes consistent with a dataset transform.
    image = jax.random.normal(k_img, (4, 16, 16), dtype=jnp.float32)
    label = jax.random.randint(k_lbl, (1, 16, 16), 0, 19, dtype=jnp.int32)

    size = [20, 24]             # target (H, W) before the random ratio
    ratio_range = [0.75, 1.25]

    image_out, label_out, (out_h, out_w) = resize(
        image, label, size, ratio_range, key=k_ratio)
    jax.block_until_ready((image_out, label_out))

    ref_img = _ref_bilinear(image, out_h, out_w)
    ref_lbl = _ref_nearest(label, out_h, out_w)

    assert image_out.shape == (4, out_h, out_w) and image_out.dtype == image.dtype
    assert label_out.shape == (1, out_h, out_w) and label_out.dtype == label.dtype
    assert jnp.allclose(image_out, ref_img, atol=1e-3, rtol=1e-3)
    assert jnp.array_equal(label_out, ref_lbl)

    print("KERNEL_OK")
</pallas_src>

<mosaic_0001>
module attributes {stable_mosaic.version = 11 : i64} {
  func.func @_resize_plane_kernel(%arg0: i32, %arg1: memref<24x16xf32, #tpu.memory_space<vmem>>, %arg2: memref<16x28xf32, #tpu.memory_space<vmem>>, %arg3: memref<1x16x16xf32, #tpu.memory_space<vmem>>, %arg4: memref<1x24x28xf32, #tpu.memory_space<vmem>>) attributes {dimension_semantics = [#tpu.dimension_semantics<parallel>], iteration_bounds = array<i64: 4>, scalar_prefetch = 0 : i64, scratch_operands = 0 : i64, tpu.core_type = #tpu.core_type<tc>, window_params = [{pipeline_mode = #tpu.pipeline_mode<synchronous>, transform_indices = @transform_0, window_bounds = array<i64: 24, 16>}, {pipeline_mode = #tpu.pipeline_mode<synchronous>, transform_indices = @transform_1, window_bounds = array<i64: 16, 28>}, {transform_indices = @transform_2, window_bounds = array<i64: 1, 16, 16>}, {transform_indices = @transform_3, window_bounds = array<i64: 1, 24, 28>}]} {
    %c0 = arith.constant 0 : index
    %c0_0 = arith.constant 0 : index
    %c0_1 = arith.constant 0 : index
    %0 = vector.load %arg3[%c0, %c0_0, %c0_1] : memref<1x16x16xf32, #tpu.memory_space<vmem>>, vector<1x16x16xf32>
    %1 = vector.shape_cast %0 : vector<1x16x16xf32> to vector<16x16xf32>
    %c0_2 = arith.constant 0 : index
    %c0_3 = arith.constant 0 : index
    %2 = vector.load %arg1[%c0_2, %c0_3] : memref<24x16xf32, #tpu.memory_space<vmem>>, vector<24x16xf32>
    %cst = arith.constant dense<0.000000e+00> : vector<24x16xf32>
    %3 = tpu.matmul %2, %1, %cst {dimension_numbers = #tpu.dot_dimension_numbers<[1], [0], [0], [1], [0, 0, 1, 1], [], []>} : vector<24x16xf32>, vector<16x16xf32>, vector<24x16xf32> -> vector<24x16xf32>
    %c0_4 = arith.constant 0 : index
    %c0_5 = arith.constant 0 : index
    %4 = vector.load %arg2[%c0_4, %c0_5] : memref<16x28xf32, #tpu.memory_space<vmem>>, vector<16x28xf32>
    %cst_6 = arith.constant dense<0.000000e+00> : vector<24x28xf32>
    %5 = tpu.matmul %3, %4, %cst_6 {dimension_numbers = #tpu.dot_dimension_numbers<[1], [0], [0], [1], [0, 0, 1, 1], [], []>} : vector<24x16xf32>, vector<16x28xf32>, vector<24x28xf32> -> vector<24x28xf32>
    %c0_7 = arith.constant 0 : index
    %c0_8 = arith.constant 0 : index
    %c0_9 = arith.constant 0 : index
    %6 = vector.load %arg4[%c0_7, %c0_8, %c0_9] : memref<1x24x28xf32, #tpu.memory_space<vmem>>, vector<1x24x28xf32>
    %7 = vector.shape_cast %6 : vector<1x24x28xf32> to vector<24x28xf32>
    %8 = vector.shape_cast %5 : vector<24x28xf32> to vector<1x24x28xf32>
    tpu.vector_store %arg4[%c0_7, %c0_8, %c0_9], %8 {strides = array<i32>} : memref<1x24x28xf32, #tpu.memory_space<vmem>>, vector<1x24x28xf32>,
    return
  }
  func.func @transform_0(%arg0: i32) -> (i32, i32) {
    %c0_i32 = arith.constant 0 : i32
    %c0_i32_0 = arith.constant 0 : i32
    %c0_i32_1 = arith.constant 0 : i32
    return %c0_i32, %c0_i32_0 : i32, i32
  }
  func.func @transform_1(%arg0: i32) -> (i32, i32) {
    %c0_i32 = arith.constant 0 : i32
    %c0_i32_0 = arith.constant 0 : i32
    %c0_i32_1 = arith.constant 0 : i32
    return %c0_i32, %c0_i32_0 : i32, i32
  }
  func.func @transform_2(%arg0: i32) -> (i32, i32, i32) {
    %c0_i32 = arith.constant 0 : i32
    %c0_i32_0 = arith.constant 0 : i32
    %c0_i32_1 = arith.constant 0 : i32
    return %arg0, %c0_i32, %c0_i32_0 : i32, i32, i32
  }
  func.func @transform_3(%arg0: i32) -> (i32, i32, i32) {
    %c0_i32 = arith.constant 0 : i32
    %c0_i32_0 = arith.constant 0 : i32
    %c0_i32_1 = arith.constant 0 : i32
    return %arg0, %c0_i32, %c0_i32_0 : i32, i32, i32
  }
}

</mosaic_0001>

<llo_original>
// kernel: tpu_custom_call.1
$region0: #{tpu_custom_call.1}
  #allocation0 [shape = 'u32[]', space=smem, size = 0x4, offset = 0x4, fixed_abs, tag = 'smem constant byte address 0x4 - core index']
  #allocation1 [shape = 'u32[144,128]{1,0:T(1,128)}', space=vmem, size = 0x12000, scoped, tag = 'internal scratch']
  %s0 = inlined_call_operand.vmem [shape: f32[24,16], index: 0, kind: input, shape index: {}]
  %s1 = inlined_call_operand.vmem [shape: f32[16,28], index: 1, kind: input, shape index: {}]
  %s2 = inlined_call_operand.hbm [shape: f32[4,16,16], index: 2, kind: input, shape index: {}]
  %s3 = inlined_call_operand.hbm [shape: f32[4,24,28], index: 3, kind: output, shape index: {}]
  %s4 = sld [smem:[#allocation0]]
  $region49: #{tpu_custom_call.1} parent=0
    _
  %s6 = ssub.s32 1, %s4
  %s7 = scalar_select 0, %s6, %s4
  $region1: #{tpu_custom_call.1} parent=0
    #allocation2 [shape = 'u8[16384]{0}', space=vmem, size = 0x4000, scoped, tag = 'input window, operand 2']
    #allocation3 [shape = 's32[2]{0}', space=sflag, size = 0x8, scoped, tag = 'scoped memory for tpu_custom_call.1']
    #allocation4 [shape = 's32[2]{0}', space=sflag, size = 0x8, scoped, tag = 'scoped memory for tpu_custom_call.1']
    #allocation5 [shape = 'u8[24576]{0}', space=vmem, size = 0x6000, scoped, tag = 'output window, operand 0']
    %8 = vsyncpa [#allocation3], 0
    %s9 = scalar_lea.sflag [#allocation3], 1
    %10 = vsyncpa %s9, 0
    %11 = vsyncpa [#allocation4], 0
    %s12 = scalar_lea.sflag [#allocation4], 1
    %13 = vsyncpa %s12, 0
    loop: start=0, step=1, limit=6
    $region2: #{tpu_custom_call.1} parent=1 // loop_pre_header
      _
    $region3: #{tpu_custom_call.1} parent=1 // loop_header
      %s15 = sphi 0, %s19
      %p16 = scmp.ge.s32.totalorder %s15, 6
      %s23 = sphi 0, %s23
      %s25 = sphi 0, %s23
      %s26 = sphi 0, %s25
      %s40 = sphi 0, %s26
      %s44 = sphi 0, %s44
      %s46 = sphi 0, %s44
      %s47 = sphi 0, %s46
      %s61 = sphi 0, %s47
      %s67 = sphi 0, %s69
      %s70 = sphi 0, %s67
      %s71 = sphi 0, %s70
      %s87 = sphi 0, %s71
      %s93 = sphi 0, %s95
      %s96 = sphi 0, %s93
      %s97 = sphi 0, %s96
      %s113 = sphi 0, %s97
    $region4: #{tpu_custom_call.1} parent=1 // loop_header_branch
      %18 = sbr.rel (%p16) target = $region8
    $region5: #{tpu_custom_call.1} parent=1 // loop_body
      %s20 = ssub.s32 %s15, 1
      %s21 = ssub.s32 %s15, 2
      %s22 = sadd.s32 %s15, 1
      %s24 = sadd.s32 %s23, 1
      %p27 = scmp.eq.s32.totalorder %s15, 3
      %p28 = scmp.ne.s32.totalorder %s23, %s25
      %p29 = scmp.eq.s32.totalorder %s15, 0
      %p30 = por %p28, %p29
      %p31 = scmp.ne.s32.totalorder %s23, %s25
      %p32 = scmp.eq.s32.totalorder %s20, 3
      %p33 = por %p31, %p32
      %p34 = scmp.ne.s32.totalorder %s25, %s26
      %p35 = scmp.eq.s32.totalorder %s20, 0
      %p36 = por %p34, %p35
      %p37 = scmp.ne.s32.totalorder %s25, %s26
      %p38 = scmp.eq.s32.totalorder %s21, 3
      %p39 = por %p37, %p38
      %p41 = scmp.ne.s32.totalorder %s26, %s40
      %p42 = scmp.eq.s32.totalorder %s21, 0
      %p43 = por %p41, %p42
      %s45 = sadd.s32 %s44, 1
      %p48 = scmp.eq.s32.totalorder %s15, 3
      %p49 = scmp.ne.s32.totalorder %s44, %s46
      %p50 = scmp.eq.s32.totalorder %s15, 0
      %p51 = por %p49, %p50
      %p52 = scmp.ne.s32.totalorder %s44, %s46
      %p53 = scmp.eq.s32.totalorder %s20, 3
      %p54 = por %p52, %p53
      %p55 = scmp.ne.s32.totalorder %s46, %s47
      %p56 = scmp.eq.s32.totalorder %s20, 0
      %p57 = por %p55, %p56
      %p58 = scmp.ne.s32.totalorder %s46, %s47
      %p59 = scmp.eq.s32.totalorder %s21, 3
      %p60 = por %p58, %p59
      %p62 = scmp.ne.s32.totalorder %s47, %s61
      %p63 = scmp.eq.s32.totalorder %s21, 0
      %p64 = por %p62, %p63
      %s65 = ssub.s32 %s15, %s22
      %p66 = scmp.eq.s32.totalorder %s65, 0
      %s68 = sadd.s32 %s67, 1
      %s69 = scalar_select %p66, %s67, %s68
      %p72 = pneg %p66
      %p73 = scmp.eq.s32.totalorder %s15, 3
      %p74 = por %p72, %p73
      %p75 = scmp.ne.s32.totalorder %s67, %s70
      %p76 = scmp.eq.s32.totalorder %s15, 0
      %p77 = por %p75, %p76
      %p78 = scmp.ne.s32.totalorder %s67, %s70
      %p79 = scmp.eq.s32.totalorder %s20, 3
      %p80 = por %p78, %p79
      %p81 = scmp.ne.s32.totalorder %s70, %s71
      %p82 = scmp.eq.s32.totalorder %s20, 0
      %p83 = por %p81, %p82
      %p84 = scmp.ne.s32.totalorder %s70, %s71
      %p85 = scmp.eq.s32.totalorder %s21, 3
      %p86 = por %p84, %p85
      %p88 = scmp.ne.s32.totalorder %s71, %s87
      %p89 = scmp.eq.s32.totalorder %s21, 0
      %p90 = por %p88, %p89
      %s91 = ssub.s32 %s15, %s22
      %p92 = scmp.eq.s32.totalorder %s91, 0
      %s94 = sadd.s32 %s93, 1
      %s95 = scalar_select %p92, %s93, %s94
      %p98 = pneg %p92
      %p99 = scmp.eq.s32.totalorder %s15, 3
      %p100 = por %p98, %p99
      %p101 = scmp.ne.s32.totalorder %s93, %s96
      %p102 = scmp.eq.s32.totalorder %s15, 0
      %p103 = por %p101, %p102
      %p104 = scmp.ne.s32.totalorder %s93, %s96
      %p105 = scmp.eq.s32.totalorder %s20, 3
      %p106 = por %p104, %p105
      %p107 = scmp.ne.s32.totalorder %s96, %s97
      %p108 = scmp.eq.s32.totalorder %s20, 0
      %p109 = por %p107, %p108
      %p110 = scmp.ne.s32.totalorder %s96, %s97
      %p111 = scmp.eq.s32.totalorder %s21, 3
      %p112 = por %p110, %p111
      %p114 = scmp.ne.s32.totalorder %s97, %s113
      %p115 = scmp.eq.s32.totalorder %s21, 0
      %p116 = por %p114, %p115
      %p117 = scmp.le.s32.totalorder 1, %s15
      %p118 = scmp.lt.s32.totalorder %s15, 5
      %p119 = pnand %p117, %p118
      %p120 = pneg %p119
      // Predicated region
      $region9: #{tpu_custom_call.1} parent=5 // pred_check
        _
      $region10: #{tpu_custom_call.1} parent=5 // pred_check_branch
        %122 = sbr.rel (%p119) target = $region12
      $region11: #{tpu_custom_call.1} parent=5 // pred_region
        %s123 = ssub.s32 %s15, 1
        // Predicated region
        $region13: #{tpu_custom_call.1} parent=11 // pred_check
          %p124 = pneg %p36
        $region14: #{tpu_custom_call.1} parent=11 // pred_check_branch
          %126 = sbr.rel (%p124) target = $region16
        $region15: #{tpu_custom_call.1} parent=11 // pred_region
          _
        $region16: #{tpu_custom_call.1} parent=11 // pred_fallthru
          _
        // Predicated region
        $region17: #{tpu_custom_call.1} parent=11 // pred_check
          %p127 = pneg %p57
        $region18: #{tpu_custom_call.1} parent=11 // pred_check_branch
          %129 = sbr.rel (%p127) target = $region20
        $region19: #{tpu_custom_call.1} parent=11 // pred_region
          _
        $region20: #{tpu_custom_call.1} parent=11 // pred_fallthru
          _
      $region12: #{tpu_custom_call.1} parent=5 // pred_fallthru
        _
      %p130 = scmp.lt.s32.totalorder %s15, 4
      // Predicated region
      $region21: #{tpu_custom_call.1} parent=5 // pred_check
        %p131 = pneg %p130
      $region22: #{tpu_custom_call.1} parent=5 // pred_check_branch
        %133 = sbr.rel (%p131) target = $region24
      $region23: #{tpu_custom_call.1} parent=5 // pred_region
        // Predicated region
        $region25: #{tpu_custom_call.1} parent=23 // pred_check
          %p134 = pneg %p77
        $region26: #{tpu_custom_call.1} parent=23 // pred_check_branch
          %136 = sbr.rel (%p134) target = $region28
        $region27: #{tpu_custom_call.1} parent=23 // pred_region
          %s137 = sand.u32 %s67, 1
          %s138 = scalar_lea.sflag [#allocation3], %s137
          %s139 = sand.u32 %s67, 1
          %s140 = smul.addr %s139, 16
          %s141 = scalar_lea.vmem [#allocation2], %s140
          %s143 = ssub.s32 256, 256
          %144 = vsyncadd %s138, %s143
          %s145 = smul.addr %s15, 2
          %s146 = smul.addr %s145, 128
          %s147 = scalar_lea.hbm %s2, %s146
          %s148 = sshll.u32 %s141, 4
          %s149 = int_to_ptr.vmem [resolvable:$true] %s148
          %154 = dma.hbm_to_vmem [thread:$0]  %s147, 256, %s149, %s138, 128, 128, 8
        $region28: #{tpu_custom_call.1} parent=23 // pred_fallthru
          _
      $region24: #{tpu_custom_call.1} parent=5 // pred_fallthru
        _
      %p155 = scmp.le.s32.totalorder 1, %s15
      %p156 = scmp.lt.s32.totalorder %s15, 5
      %p157 = pnand %p155, %p156
      %p158 = pneg %p157
      // Predicated region
      $region29: #{tpu_custom_call.1} parent=5 // pred_check
        _
      $region30: #{tpu_custom_call.1} parent=5 // pred_check_branch
        %160 = sbr.rel (%p157) target = $region32
      $region31: #{tpu_custom_call.1} parent=5 // pred_region
        %s161 = ssub.s32 %s15, 1
        %s162 = sand.u32 %s70, 1
        %s163 = scalar_lea.sflag [#allocation3], %s162
        %s164 = sand.u32 %s70, 1
        %s165 = smul.addr %s164, 16
        %s166 = scalar_lea.vmem [#allocation2], %s165
        // Predicated region
        $region33: #{tpu_custom_call.1} parent=31 // pred_check
          %p167 = pneg %p83
        $region34: #{tpu_custom_call.1} parent=31 // pred_check_branch
          %169 = sbr.rel (%p167) target = $region36
        $region35: #{tpu_custom_call.1} parent=31 // pred_region
          %170 = dma.done %s163, 256
        $region36: #{tpu_custom_call.1} parent=31 // pred_fallthru
          _
        %p171 = pneg %p36
        %p172 = pneg %p33
        %p173 = pneg %p57
        %p174 = pneg %p54
        %s175 = sand.u32 %s70, 1
        %s176 = scalar_lea.sflag [#allocation3], %s175
        %s177 = sand.u32 %s70, 1
        %s178 = smul.addr %s177, 16
        %s179 = scalar_lea.vmem [#allocation2], %s178
        %p180 = pneg %p83
        %p181 = pneg %p80
        %p182 = pneg %p109
        %p183 = pneg %p106
        %s184 = sand.u32 %s96, 1
        %s185 = scalar_lea.sflag [#allocation4], %s184
        %s186 = sand.u32 %s96, 1
        %s187 = smul.addr %s186, 24
        %s188 = scalar_lea.vmem [#allocation5], %s187
        %v189 = vld [vmem:[%s166] sm:$0xff]
        %v190 = vld [vmem:[%s166 + $0x8] sm:$0xff]
        %v191 = vld [vmem:[%s0] sm:$0xff]
        %v192 = vld [vmem:[%s0 + $0x8] sm:$0xff]
        %v193 = vld [vmem:[%s0 + $0x10] sm:$0xff]
        %vm194 = vcmask 130048
        %v196 = vsel %vm194, %v191, 0
        %v199 = vsel %vm194, %v192, 0
        %v202 = vsel %vm194, %v193, 0
        %204 = vmatprep.subr.mxu0 0.0
        %205 = vmatpush1.msra.mxu0 %v189
        %206 = vmatprep.subr.mxu0 0.0
        %207 = vmatpush1.msra.mxu0 %v190
        %208 = vmatprep.subr.mxu0 0.0
        %209 = vmatpush1.msra.mxu0 0.0
        %210 = vmatprep.subr.mxu0 0.0
        %211 = vmatpush1.msra.mxu0 0.0
        %212 = vmatprep.subr.mxu0 0.0
        %213 = vmatpush1.msra.mxu0 0.0
        %214 = vmatprep.subr.mxu0 0.0
        %215 = vmatpush1.msra.mxu0 0.0
        %216 = vmatprep.subr.mxu0 0.0
        %217 = vmatpush1.msra.mxu0 0.0
        %218 = vmatprep.subr.mxu0 0.0
        %219 = vmatpush1.msra.mxu0 0.0
        %220 = vmatprep.subr.mxu0 0.0
        %221 = vmatpush1.msra.mxu0 0.0
        %222 = vmatprep.subr.mxu0 0.0
        %223 = vmatpush1.msra.mxu0 0.0
        %224 = vmatprep.subr.mxu0 0.0
        %225 = vmatpush1.msra.mxu0 0.0
        %226 = vmatprep.subr.mxu0 0.0
        %227 = vmatpush1.msra.mxu0 0.0
        %228 = vmatprep.subr.mxu0 0.0
        %229 = vmatpush1.msra.mxu0 0.0
        %230 = vmatprep.subr.mxu0 0.0
        %231 = vmatpush1.msra.mxu0 0.0
        %232 = vmatprep.subr.mxu0 0.0
        %233 = vmatpush1.msra.mxu0 0.0
        %234 = vmatprep.subr.mxu0 0.0
        %235 = vmatpush1.msra.mxu0 0.0
        %236 = vmatprep.subr.mxu0 0.0
        %237 = vmatpush1.msra.mxu0 0.0
        %238 = vmatprep.subr.mxu0 0.0
        %239 = vmatpush1.msra.mxu0 0.0
        %240 = vmatprep.subr.mxu0 0.0
        %241 = vmatpush1.msra.mxu0 0.0
        %242 = vmatprep.subr.mxu0 0.0
        %243 = vmatpush1.msra.mxu0 0.0
        %244 = vmatprep.subr.mxu0 0.0
        %245 = vmatpush1.msra.mxu0 0.0
        %246 = vmatprep.subr.mxu0 0.0
        %247 = vmatpush1.msra.mxu0 0.0
        %248 = vmatprep.subr.mxu0 0.0
        %249 = vmatpush1.msra.mxu0 0.0
        %250 = vmatprep.subr.mxu0 0.0
        %251 = vmatpush1.msra.mxu0 0.0
        %252 = vmatprep.subr.mxu0 0.0
        %253 = vmatpush1.msra.mxu0 0.0
        %254 = vmatprep.subr.mxu0 0.0
        %255 = vmatpush1.msra.mxu0 0.0
        %256 = vmatprep.subr.mxu0 0.0
        %257 = vmatpush1.msra.mxu0 0.0
        %258 = vmatprep.subr.mxu0 0.0
        %259 = vmatpush1.msra.mxu0 0.0
        %260 = vmatprep.subr.mxu0 0.0
        %261 = vmatpush1.msra.mxu0 0.0
        %262 = vmatprep.subr.mxu0 0.0
        %263 = vmatpush1.msra.mxu0 0.0
        %264 = vmatprep.subr.mxu0 0.0
        %265 = vmatpush1.msra.mxu0 0.0
        %266 = vmatprep.subr.mxu0 0.0
        %267 = vmatpush1.msra.mxu0 0.0
        %268 = vmatprep.mubr.f32.mxu0 0.0
        %269 = vmatmul.mubr.f32.gmra.mrb[0].mxu0 %v196
        %v270 = vpop.f32.mrb[0].mxu0
        %v271 = vadd.f32 0.0, %v270
        %v272 = vpop.f32.mrb[0].mxu0
        %273 = vmatprep.mubr.f32.mxu0 0.0
        %274 = vmatmul.mubr.f32.gmra.mrb[0].mxu0 %v199
        %v275 = vpop.f32.mrb[0].mxu0
        %v276 = vadd.f32 0.0, %v275
        %v277 = vpop.f32.mrb[0].mxu0
        %278 = vmatprep.mubr.f32.mxu0 0.0
        %279 = vmatmul.mubr.f32.gmra.mrb[0].mxu0 %v202
        %v280 = vpop.f32.mrb[0].mxu0
        %v281 = vadd.f32 0.0, %v280
        %v282 = vpop.f32.mrb[0].mxu0
        %283 = vdwg.mxu0
        %v284 = vld [vmem:[%s1] sm:$0xff]
        %v285 = vld [vmem:[%s1 + $0x8] sm:$0xff]
        %v287 = vsel %vm194, %v271, 0
        %v290 = vsel %vm194, %v276, 0
        %v293 = vsel %vm194, %v281, 0
        %295 = vmatprep.subr.mxu0 0.0
        %296 = vmatpush1.msra.mxu0 %v284
        %297 = vmatprep.subr.mxu0 0.0
        %298 = vmatpush1.msra.mxu0 %v285
        %299 = vmatprep.subr.mxu0 0.0
        %300 = vmatpush1.msra.mxu0 0.0
        %301 = vmatprep.subr.mxu0 0.0
        %302 = vmatpush1.msra.mxu0 0.0
        %303 = vmatprep.subr.mxu0 0.0
        %304 = vmatpush1.msra.mxu0 0.0
        %305 = vmatprep.subr.mxu0 0.0
        %306 = vmatpush1.msra.mxu0 0.0
        %307 = vmatprep.subr.mxu0 0.0
        %308 = vmatpush1.msra.mxu0 0.0
        %309 = vmatprep.subr.mxu0 0.0
        %310 = vmatpush1.msra.mxu0 0.0
        %311 = vmatprep.subr.mxu0 0.0
        %312 = vmatpush1.msra.mxu0 0.0
        %313 = vmatprep.subr.mxu0 0.0
        %314 = vmatpush1.msra.mxu0 0.0
        %315 = vmatprep.subr.mxu0 0.0
        %316 = vmatpush1.msra.mxu0 0.0
        %317 = vmatprep.subr.mxu0 0.0
        %318 = vmatpush1.msra.mxu0 0.0
        %319 = vmatprep.subr.mxu0 0.0
        %320 = vmatpush1.msra.mxu0 0.0
        %321 = vmatprep.subr.mxu0 0.0
        %322 = vmatpush1.msra.mxu0 0.0
        %323 = vmatprep.subr.mxu0 0.0
        %324 = vmatpush1.msra.mxu0 0.0
        %325 = vmatprep.subr.mxu0 0.0
        %326 = vmatpush1.msra.mxu0 0.0
        %327 = vmatprep.subr.mxu0 0.0
        %328 = vmatpush1.msra.mxu0 0.0
        %329 = vmatprep.subr.mxu0 0.0
        %330 = vmatpush1.msra.mxu0 0.0
        %331 = vmatprep.subr.mxu0 0.0
        %332 = vmatpush1.msra.mxu0 0.0
        %333 = vmatprep.subr.mxu0 0.0
        %334 = vmatpush1.msra.mxu0 0.0
        %335 = vmatprep.subr.mxu0 0.0
        %336 = vmatpush1.msra.mxu0 0.0
        %337 = vmatprep.subr.mxu0 0.0
        %338 = vmatpush1.msra.mxu0 0.0
        %339 = vmatprep.subr.mxu0 0.0
        %340 = vmatpush1.msra.mxu0 0.0
        %341 = vmatprep.subr.mxu0 0.0
        %342 = vmatpush1.msra.mxu0 0.0
        %343 = vmatprep.subr.mxu0 0.0
        %344 = vmatpush1.msra.mxu0 0.0
        %345 = vmatprep.subr.mxu0 0.0
        %346 = vmatpush1.msra.mxu0 0.0
        %347 = vmatprep.subr.mxu0 0.0
        %348 = vmatpush1.msra.mxu0 0.0
        %349 = vmatprep.subr.mxu0 0.0
        %350 = vmatpush1.msra.mxu0 0.0
        %351 = vmatprep.subr.mxu0 0.0
        %352 = vmatpush1.msra.mxu0 0.0
        %353 = vmatprep.subr.mxu0 0.0
        %354 = vmatpush1.msra.mxu0 0.0
        %355 = vmatprep.subr.mxu0 0.0
        %356 = vmatpush1.msra.mxu0 0.0
        %357 = vmatprep.subr.mxu0 0.0
        %358 = vmatpush1.msra.mxu0 0.0
        %359 = vmatprep.mubr.f32.mxu0 0.0
        %360 = vmatmul.mubr.f32.gmra.mrb[0].mxu0 %v287
        %v361 = vpop.f32.mrb[0].mxu0
        %v362 = vadd.f32 0.0, %v361
        %v363 = vpop.f32.mrb[0].mxu0
        %364 = vmatprep.mubr.f32.mxu0 0.0
        %365 = vmatmul.mubr.f32.gmra.mrb[0].mxu0 %v290
        %v366 = vpop.f32.mrb[0].mxu0
        %v367 = vadd.f32 0.0, %v366
        %v368 = vpop.f32.mrb[0].mxu0
        %369 = vmatprep.mubr.f32.mxu0 0.0
        %370 = vmatmul.mubr.f32.gmra.mrb[0].mxu0 %v293
        %v371 = vpop.f32.mrb[0].mxu0
        %v372 = vadd.f32 0.0, %v371
        %v373 = vpop.f32.mrb[0].mxu0
        %374 = vdwg.mxu0
        %vm375 = vcmask 228352
        %376 = vst.msk [vmem:[%s188] sm:$0xff] %vm375, %v362
        %377 = vst.msk [vmem:[%s188 + $0x8] sm:$0xff] %vm375, %v367
        %378 = vst.msk [vmem:[%s188 + $0x10] sm:$0xff] %vm375, %v372
        %s379 = sand.u32 %s96, 1
        %s380 = scalar_lea.sflag [#allocation4], %s379
        %s381 = sand.u32 %s96, 1
        %s382 = smul.addr %s381, 24
        %s383 = scalar_lea.vmem [#allocation5], %s382
        // Predicated region
        $region37: #{tpu_custom_call.1} parent=31 // pred_check
          %p384 = pneg %p106
        $region38: #{tpu_custom_call.1} parent=31 // pred_check_branch
          %386 = sbr.rel (%p384) target = $region40
        $region39: #{tpu_custom_call.1} parent=31 // pred_region
          %s388 = ssub.s32 384, 384
          %389 = vsyncadd %s380, %s388
          %s390 = smul.addr %s20, 3
          %s391 = smul.addr %s390, 128
          %s392 = scalar_lea.hbm %s3, %s391
          %s393 = sshll.u32 %s383, 4
          %s394 = int_to_ptr.vmem [resolvable:$true] %s393
          %399 = dma.vmem_to_hbm [thread:$0]  %s394, 384, %s392, %s380, 128, 128, 8
        $region40: #{tpu_custom_call.1} parent=31 // pred_fallthru
          _
      $region32: #{tpu_custom_call.1} parent=5 // pred_fallthru
        _
      %p400 = scmp.le.s32.totalorder 2, %s15
      // Predicated region
      $region41: #{tpu_custom_call.1} parent=5 // pred_check
        %p401 = pneg %p400
      $region42: #{tpu_custom_call.1} parent=5 // pred_check_branch
        %403 = sbr.rel (%p401) target = $region44
      $region43: #{tpu_custom_call.1} parent=5 // pred_region
        %s404 = ssub.s32 %s15, 2
        // Predicated region
        $region45: #{tpu_custom_call.1} parent=43 // pred_check
          %p405 = pneg %p112
        $region46: #{tpu_custom_call.1} parent=43 // pred_check_branch
          %407 = sbr.rel (%p405) target = $region48
        $region47: #{tpu_custom_call.1} parent=43 // pred_region
          %s408 = sand.u32 %s97, 1
          %s409 = scalar_lea.sflag [#allocation4], %s408
          %s410 = sand.u32 %s97, 1
          %s411 = smul.addr %s410, 24
          %s412 = scalar_lea.vmem [#allocation5], %s411
          %413 = dma.done %s409, 384
        $region48: #{tpu_custom_call.1} parent=43 // pred_fallthru
          _
      $region44: #{tpu_custom_call.1} parent=5 // pred_fallthru
        _
    $region6: #{tpu_custom_call.1} parent=1 // loop_footer
      %s19 = sadd.s32 1, %s15
    $region7: #{tpu_custom_call.1} parent=1 // loop_footer_branch
      %14 = sbr.rel target = $region3
    $region8: #{tpu_custom_call.1} parent=1 // loop_exit
      _
    %414 = vsyncpa [#allocation3], 1
    %s415 = scalar_lea.sflag [#allocation3], 1
    %416 = vsyncpa %s415, 1
    %417 = vsyncpa [#allocation4], 1
    %s418 = scalar_lea.sflag [#allocation4], 1
    %419 = vsyncpa %s418, 1

</llo_original>
